<compile_context>
chip_gen: v7x
topology: tpu7x:2x2x1
jax: 0.10.0
libtpu: 0.0.40
codegen_flags: <defaults>
</compile_context>

<pallas_src>
import math
import functools

import jax
import jax.numpy as jnp
from jax.experimental import pallas as pl
from jax.experimental.pallas import tpu as pltpu


_VMEM_LIMIT_BYTES = 32 * 1024 * 1024  # fits scoped VMEM on v5e/v6e/v7x


def _vmem_spec():
    return pl.BlockSpec(memory_space=pltpu.MemorySpace.VMEM)


def _pick_block_m(M, target=4096):
    # Token (lane-axis) tile.  `target` is a multiple of 128.  If the whole
    # token axis fits in one step, use it (block == full dim is always legal,
    # tail lanes are masked on store); otherwise tile in `target`-wide blocks
    # (divisible by 128; a partial last block is handled by Pallas masking).
    if M <= target:
        return M
    return target


# --------------------------------------------------------------------------
# Pallas kernels (all transposed: feature dim on sublanes, tokens on lanes)
# --------------------------------------------------------------------------

def _linear_t_kernel(xT_ref, wT_ref, b_ref, o_ref):
    # xT: (D, bm) token block; wT: (H, D) resident; b: (H, 1) resident
    # o = W^T @ x^T + b  -> (H, bm), lane-dense store over tokens.
    acc = jnp.dot(wT_ref[...], xT_ref[...], preferred_element_type=jnp.float32)
    o_ref[...] = (acc + b_ref[...]).astype(o_ref.dtype)


def _mlp_t_kernel(xT_ref, w1T_ref, b1_ref, w2T_ref, b2_ref, o_ref):
    # Linear -> ReLU -> Linear, fused per token block; weights resident.
    h = jnp.dot(w1T_ref[...], xT_ref[...], preferred_element_type=jnp.float32)
    h = jnp.maximum(h + b1_ref[...], 0.0)
    acc = jnp.dot(w2T_ref[...], h, preferred_element_type=jnp.float32)
    o_ref[...] = (acc + b2_ref[...]).astype(o_ref.dtype)


def _gather_rows_t(ids, tblT):
    # Exact blocked gather: emb[:, j] = table[ids[j], :]^T, done with V
    # compare+selects (VPU only, bit-exact).  ids: (1, bm) int32,
    # tblT: (H, V) f32 -> (H, bm) f32.
    # NOTE: out-of-range ids produce zero rows here; PyTorch nn.Embedding
    # would raise instead (no device-side assert on TPU).
    H, V = tblT.shape
    emb = jnp.zeros((H, ids.shape[1]), jnp.float32)
    for v in range(V):                       # V is small & static (mode vocab)
        emb = jnp.where(ids == v, tblT[:, v:v + 1], emb)
    return emb


def _lookup_t_kernel(ids_ref, tblT_ref, o_ref):
    # ids: (1, bm); tblT: (H, V) resident in VMEM -> o: (H, bm)
    emb = _gather_rows_t(ids_ref[...], tblT_ref[...])
    o_ref[...] = emb.astype(o_ref.dtype)


def _lookup_mlp_t_kernel(ids_ref, tblT_ref, wT_ref, b_ref, o_ref):
    # Fused Embedding -> ReLU -> Linear in a single kernel (no HBM round trip
    # for the intermediate embeddings).
    emb = _gather_rows_t(ids_ref[...], tblT_ref[...])          # (H, bm) f32
    h = jnp.maximum(emb, 0.0)
    acc = jnp.dot(wT_ref[...], h, preferred_element_type=jnp.float32)
    o_ref[...] = (acc + b_ref[...]).astype(o_ref.dtype)


def _sinusoidal_kernel(t_ref, f2_ref, o_ref, *, half):
    # t: (B, 1), f2: (1, 2*half) = [freqs | freqs]  -> o: (B, 2*half)
    # Single full-width store; lane-select picks cos for the first half and
    # sin for the second half (avoids a lane-axis concat / partial stores).
    args = t_ref[...].astype(jnp.float32) * f2_ref[...]
    lane = jax.lax.broadcasted_iota(jnp.int32, args.shape, 1)
    o_ref[...] = jnp.where(lane < half, jnp.cos(args), jnp.sin(args))


# --------------------------------------------------------------------------
# Wrappers (layout plumbing: reshape/transpose so tokens sit on the lane axis)
# --------------------------------------------------------------------------

def _num_rows(lead):
    return math.prod(lead) if lead else 1


def pallas_linear(x, w, b, *, block_m=4096):
    lead = x.shape[:-1]
    D = x.shape[-1]
    H = w.shape[1]
    M = _num_rows(lead)
    xT = x.reshape(M, D).T                          # (D, M): tokens on lanes
    bm = _pick_block_m(M, block_m)
    grid = (pl.cdiv(M, bm),)
    outT = pl.pallas_call(
        _linear_t_kernel,
        out_shape=jax.ShapeDtypeStruct((H, M), x.dtype),
        grid=grid,
        in_specs=[
            pl.BlockSpec((D, bm), lambda i: (0, i)),   # x^T tiled over tokens
            pl.BlockSpec((H, D), lambda i: (0, 0)),    # W^T resident
            pl.BlockSpec((H, 1), lambda i: (0, 0)),    # bias resident
        ],
        out_specs=pl.BlockSpec((H, bm), lambda i: (0, i)),
        compiler_params=pltpu.CompilerParams(
            dimension_semantics=("parallel",),
            vmem_limit_bytes=_VMEM_LIMIT_BYTES,
        ),
    )(xT, w.T, b.reshape(H, 1))
    return outT.T.reshape(*lead, H)


def pallas_mlp(x, w1, b1, w2, b2, *, block_m=4096):
    lead = x.shape[:-1]
    D = x.shape[-1]
    H = w1.shape[1]
    M = _num_rows(lead)
    xT = x.reshape(M, D).T                          # (D, M)
    bm = _pick_block_m(M, block_m)
    grid = (pl.cdiv(M, bm),)
    outT = pl.pallas_call(
        _mlp_t_kernel,
        out_shape=jax.ShapeDtypeStruct((H, M), x.dtype),
        grid=grid,
        in_specs=[
            pl.BlockSpec((D, bm), lambda i: (0, i)),   # x^T tiled over tokens
            pl.BlockSpec((H, D), lambda i: (0, 0)),    # w1^T resident
            pl.BlockSpec((H, 1), lambda i: (0, 0)),    # b1 resident
            pl.BlockSpec((H, H), lambda i: (0, 0)),    # w2^T resident
            pl.BlockSpec((H, 1), lambda i: (0, 0)),    # b2 resident
        ],
        out_specs=pl.BlockSpec((H, bm), lambda i: (0, i)),
        compiler_params=pltpu.CompilerParams(
            dimension_semantics=("parallel",),
            vmem_limit_bytes=_VMEM_LIMIT_BYTES,
        ),
    )(xT, w1.T, b1.reshape(H, 1), w2.T, b2.reshape(H, 1))
    return outT.T.reshape(*lead, H)


def pallas_lookup(idx, table, *, block_m=4096):
    lead = idx.shape
    V, H = table.shape
    M = _num_rows(lead)
    ids = idx.reshape(1, M).astype(jnp.int32)       # tokens on lanes
    bm = _pick_block_m(M, block_m)
    grid = (pl.cdiv(M, bm),)
    outT = pl.pallas_call(
        _lookup_t_kernel,
        out_shape=jax.ShapeDtypeStruct((H, M), table.dtype),
        grid=grid,
        in_specs=[
            pl.BlockSpec((1, bm), lambda i: (0, i)),   # ids tiled over tokens
            pl.BlockSpec((H, V), lambda i: (0, 0)),    # table^T resident
        ],
        out_specs=pl.BlockSpec((H, bm), lambda i: (0, i)),
        compiler_params=pltpu.CompilerParams(
            dimension_semantics=("parallel",),
            vmem_limit_bytes=_VMEM_LIMIT_BYTES,
        ),
    )(ids, table.T)
    return outT.T.reshape(*lead, H)


def pallas_lookup_mlp(idx, table, w, b, *, block_m=4096):
    # Fused Embedding -> ReLU -> Linear in ONE pallas_call.
    lead = idx.shape
    V, H = table.shape
    Ho = w.shape[1]
    M = _num_rows(lead)
    ids = idx.reshape(1, M).astype(jnp.int32)
    bm = _pick_block_m(M, block_m)
    grid = (pl.cdiv(M, bm),)
    outT = pl.pallas_call(
        _lookup_mlp_t_kernel,
        out_shape=jax.ShapeDtypeStruct((Ho, M), table.dtype),
        grid=grid,
        in_specs=[
            pl.BlockSpec((1, bm), lambda i: (0, i)),   # ids tiled over tokens
            pl.BlockSpec((H, V), lambda i: (0, 0)),    # table^T resident
            pl.BlockSpec((Ho, H), lambda i: (0, 0)),   # W^T resident
            pl.BlockSpec((Ho, 1), lambda i: (0, 0)),   # bias resident
        ],
        out_specs=pl.BlockSpec((Ho, bm), lambda i: (0, i)),
        compiler_params=pltpu.CompilerParams(
            dimension_semantics=("parallel",),
            vmem_limit_bytes=_VMEM_LIMIT_BYTES,
        ),
    )(ids, table.T, w.T, b.reshape(Ho, 1))
    return outT.T.reshape(*lead, Ho)


def pallas_sinusoidal(timesteps, dim, freqs2):
    half = dim // 2
    t2d = timesteps.reshape(-1, 1).astype(jnp.float32)
    B = t2d.shape[0]
    out = pl.pallas_call(
        functools.partial(_sinusoidal_kernel, half=half),
        out_shape=jax.ShapeDtypeStruct((B, 2 * half), jnp.float32),
        in_specs=[_vmem_spec(), _vmem_spec()],
        out_specs=_vmem_spec(),
    )(t2d, freqs2)
    if dim % 2:
        # odd dim: pad a single zero column (matches torch.cat([emb, zeros]))
        out = jnp.concatenate([out, jnp.zeros((B, 1), jnp.float32)], axis=-1)
    # matches torch `embedding.squeeze()` (drops ALL size-1 dims, as torch does)
    return jnp.squeeze(out)


# --------------------------------------------------------------------------
# EmbedMode equivalent (deterministic synthetic parameters)
# --------------------------------------------------------------------------

class EmbedMode:
    def __init__(self, embedding_type, dim_input=None, dim_hidden=None, key=None):
        self.embedding_type = embedding_type
        key = jax.random.PRNGKey(0) if key is None else key
        k1, k2, k3, k4 = jax.random.split(key, 4)

        def linear_init(kw, kb, fan_in, fan_out):
            bound = 1.0 / math.sqrt(fan_in)
            w = jax.random.uniform(kw, (fan_in, fan_out), jnp.float32, -bound, bound)
            b = jax.random.uniform(kb, (fan_out,), jnp.float32, -bound, bound)
            return w, b

        if embedding_type == 'Linear':
            self.w, self.b = linear_init(k1, k2, dim_input, dim_hidden)
        elif embedding_type == 'MLP':
            self.w1, self.b1 = linear_init(k1, k2, dim_input, dim_hidden)
            self.w2, self.b2 = linear_init(k3, k4, dim_hidden, dim_hidden)
        elif embedding_type == 'LookupTable':
            self.table = jax.random.normal(k1, (dim_input, dim_hidden), jnp.float32)
        elif embedding_type == 'LookupTableMLP':
            self.table = jax.random.normal(k1, (dim_input, dim_hidden), jnp.float32)
            self.w, self.b = linear_init(k2, k3, dim_hidden, dim_hidden)
        elif embedding_type == 'SinusoidalPositionalEncoding':
            self.dim = dim_hidden
            self.max_period = 10000
            half = dim_hidden // 2
            freqs = jnp.exp(
                -math.log(self.max_period)
                * jnp.arange(half, dtype=jnp.float32) / half
            ).reshape(1, half)
            # duplicated layout [f | f] so the kernel does one full-width store
            self.freqs2 = jnp.concatenate([freqs, freqs], axis=-1)
        else:
            raise NotImplementedError(
                'Mode embedding not implemented, use `Linear`, `MLP`, `LookupTable`, '
                '`LookupTableMLP`, or `Sinusoidal`')

    def __call__(self, x):
        t = self.embedding_type
        if t == 'Linear':
            return pallas_linear(x, self.w, self.b)
        if t == 'MLP':
            return pallas_mlp(x, self.w1, self.b1, self.w2, self.b2)
        if t == 'LookupTable':
            return pallas_lookup(x, self.table)
        if t == 'LookupTableMLP':
            return pallas_lookup_mlp(x, self.table, self.w, self.b)
        if t == 'SinusoidalPositionalEncoding':
            return pallas_sinusoidal(x, self.dim, self.freqs2)
        raise NotImplementedError(t)


# --------------------------------------------------------------------------
# Pure-JAX references for verification
# --------------------------------------------------------------------------

def _ref_linear(x, w, b):
    return x @ w + b


def _ref_sinusoidal(t, dim, max_period=10000):
    half = dim // 2
    freqs = jnp.exp(-math.log(max_period) * jnp.arange(half, dtype=jnp.float32) / half)
    args = t[:, None].astype(jnp.float32) * freqs[None]
    emb = jnp.concatenate([jnp.cos(args), jnp.sin(args)], axis=-1)
    if dim % 2:
        emb = jnp.concatenate([emb, jnp.zeros_like(emb[:, :1])], axis=-1)
    return jnp.squeeze(emb)


if __name__ == "__main__":
    key = jax.random.PRNGKey(0)
    kx, kt, kts, kp = jax.random.split(key, 4)

    B, N = 2, 8
    dim_input = 8          # continuous-feature input dim
    dim_hidden = 32
    vocab = 10

    # continuous input for Linear / MLP: (batch, seq, dim_input)
    x = jax.random.normal(kx, (B, N, dim_input), jnp.float32)
    # integer tokens for LookupTable / LookupTableMLP: (batch, seq)
    tokens = jax.random.randint(kt, (B, N), 0, vocab, jnp.int32)
    # timesteps for SinusoidalPositionalEncoding: (batch,)
    timesteps = jax.random.uniform(kts, (B,), jnp.float32, 0.0, 1000.0)

    # --- Linear ---
    m_lin = EmbedMode('Linear', dim_input, dim_hidden, key=jax.random.fold_in(kp, 0))
    y_lin = jax.block_until_ready(m_lin(x))
    assert y_lin.shape == (B, N, dim_hidden)
    assert jnp.allclose(y_lin, _ref_linear(x, m_lin.w, m_lin.b), atol=1e-5)

    # --- MLP ---
    m_mlp = EmbedMode('MLP', dim_input, dim_hidden, key=jax.random.fold_in(kp, 1))
    y_mlp = jax.block_until_ready(m_mlp(x))
    ref_mlp = _ref_linear(jnp.maximum(_ref_linear(x, m_mlp.w1, m_mlp.b1), 0.0),
                          m_mlp.w2, m_mlp.b2)
    assert y_mlp.shape == (B, N, dim_hidden)
    assert jnp.allclose(y_mlp, ref_mlp, atol=1e-5)

    # --- LookupTable ---
    m_lut = EmbedMode('LookupTable', vocab, dim_hidden, key=jax.random.fold_in(kp, 2))
    y_lut = jax.block_until_ready(m_lut(tokens))
    assert y_lut.shape == (B, N, dim_hidden)
    assert jnp.allclose(y_lut, m_lut.table[tokens], atol=1e-5)

    # --- LookupTableMLP ---
    m_lum = EmbedMode('LookupTableMLP', vocab, dim_hidden, key=jax.random.fold_in(kp, 3))
    y_lum = jax.block_until_ready(m_lum(tokens))
    ref_lum = _ref_linear(jnp.maximum(m_lum.table[tokens], 0.0), m_lum.w, m_lum.b)
    assert y_lum.shape == (B, N, dim_hidden)
    assert jnp.allclose(y_lum, ref_lum, atol=1e-5)

    # --- SinusoidalPositionalEncoding ---
    m_sin = EmbedMode('SinusoidalPositionalEncoding', None, dim_hidden)
    y_sin = jax.block_until_ready(m_sin(timesteps))
    assert y_sin.shape == (B, dim_hidden)
    assert jnp.allclose(y_sin, _ref_sinusoidal(timesteps, dim_hidden), atol=1e-4)

    print("KERNEL_OK")
</pallas_src>

<mosaic_0001>
module attributes {stable_mosaic.version = 11 : i64} {
  func.func @_linear_t_kernel(%arg0: i32, %arg1: memref<8x16xf32, #tpu.memory_space<vmem>>, %arg2: memref<32x8xf32, #tpu.memory_space<vmem>>, %arg3: memref<32x1xf32, #tpu.memory_space<vmem>>, %arg4: memref<32x16xf32, #tpu.memory_space<vmem>>) attributes {dimension_semantics = [#tpu.dimension_semantics<parallel>], iteration_bounds = array<i64: 1>, scalar_prefetch = 0 : i64, scratch_operands = 0 : i64, tpu.core_type = #tpu.core_type<tc>, window_params = [{transform_indices = @transform_0, window_bounds = array<i64: 8, 16>}, {pipeline_mode = #tpu.pipeline_mode<synchronous>, transform_indices = @transform_1, window_bounds = array<i64: 32, 8>}, {pipeline_mode = #tpu.pipeline_mode<synchronous>, transform_indices = @transform_2, window_bounds = array<i64: 32, 1>}, {transform_indices = @transform_3, window_bounds = array<i64: 32, 16>}]} {
    %c0 = arith.constant 0 : index
    %c0_0 = arith.constant 0 : index
    %0 = vector.load %arg2[%c0, %c0_0] : memref<32x8xf32, #tpu.memory_space<vmem>>, vector<32x8xf32>
    %c0_1 = arith.constant 0 : index
    %c0_2 = arith.constant 0 : index
    %1 = vector.load %arg1[%c0_1, %c0_2] : memref<8x16xf32, #tpu.memory_space<vmem>>, vector<8x16xf32>
    %cst = arith.constant dense<0.000000e+00> : vector<32x16xf32>
    %2 = tpu.matmul %0, %1, %cst {dimension_numbers = #tpu.dot_dimension_numbers<[1], [0], [0], [1], [0, 0, 1, 1], [], []>} : vector<32x8xf32>, vector<8x16xf32>, vector<32x16xf32> -> vector<32x16xf32>
    %c0_3 = arith.constant 0 : index
    %c0_4 = arith.constant 0 : index
    %3 = vector.load %arg3[%c0_3, %c0_4] : memref<32x1xf32, #tpu.memory_space<vmem>>, vector<32x1xf32>
    %4 = vector.broadcast %3 : vector<32x1xf32> to vector<32x16xf32>
    %5 = arith.addf %2, %4 : vector<32x16xf32>
    %c0_5 = arith.constant 0 : index
    %c0_6 = arith.constant 0 : index
    %6 = vector.load %arg4[%c0_5, %c0_6] : memref<32x16xf32, #tpu.memory_space<vmem>>, vector<32x16xf32>
    tpu.vector_store %arg4[%c0_5, %c0_6], %5 {strides = array<i32>} : memref<32x16xf32, #tpu.memory_space<vmem>>, vector<32x16xf32>,
    return
  }
  func.func @transform_0(%arg0: i32) -> (i32, i32) {
    %c0_i32 = arith.constant 0 : i32
    %c0_i32_0 = arith.constant 0 : i32
    return %c0_i32, %arg0 : i32, i32
  }
  func.func @transform_1(%arg0: i32) -> (i32, i32) {
    %c0_i32 = arith.constant 0 : i32
    %c0_i32_0 = arith.constant 0 : i32
    %c0_i32_1 = arith.constant 0 : i32
    return %c0_i32, %c0_i32_0 : i32, i32
  }
  func.func @transform_2(%arg0: i32) -> (i32, i32) {
    %c0_i32 = arith.constant 0 : i32
    %c0_i32_0 = arith.constant 0 : i32
    %c0_i32_1 = arith.constant 0 : i32
    return %c0_i32, %c0_i32_0 : i32, i32
  }
  func.func @transform_3(%arg0: i32) -> (i32, i32) {
    %c0_i32 = arith.constant 0 : i32
    %c0_i32_0 = arith.constant 0 : i32
    return %c0_i32, %arg0 : i32, i32
  }
}

</mosaic_0001>

<llo_original>
// kernel: tpu_custom_call.1
$region0: #{tpu_custom_call.1}
  #allocation0 [shape = 'u32[]', space=smem, size = 0x4, offset = 0x4, fixed_abs, tag = 'smem constant byte address 0x4 - core index']
  #allocation1 [shape = 'u32[144,128]{1,0:T(1,128)}', space=vmem, size = 0x12000, scoped, tag = 'internal scratch']
  %s0 = inlined_call_operand.vmem [shape: f32[8,16], index: 0, kind: input, shape index: {}]
  %s1 = inlined_call_operand.vmem [shape: f32[32,8], index: 1, kind: input, shape index: {}]
  %s2 = inlined_call_operand.vmem [shape: f32[32,1], index: 2, kind: input, shape index: {}]
  %s3 = inlined_call_operand.vmem [shape: f32[32,16], index: 3, kind: output, shape index: {}]
  %s4 = sld [smem:[#allocation0]]
  $region22: #{tpu_custom_call.1} parent=0
    _
  %s6 = ssub.s32 1, %s4
  %s7 = scalar_select 0, %s6, %s4
  // Predicated region
  $region2: #{tpu_custom_call.1} parent=0 // pred_check
    _
  $region3: #{tpu_custom_call.1} parent=0 // pred_check_branch
    %9 = sbr.rel (0) target = $region5
  $region4: #{tpu_custom_call.1} parent=0 // pred_region
    _
  $region5: #{tpu_custom_call.1} parent=0 // pred_fallthru
    _
  // Predicated region
  $region6: #{tpu_custom_call.1} parent=0 // pred_check
    _
  $region7: #{tpu_custom_call.1} parent=0 // pred_check_branch
    %11 = sbr.rel (0) target = $region9
  $region8: #{tpu_custom_call.1} parent=0 // pred_region
    _
  $region9: #{tpu_custom_call.1} parent=0 // pred_fallthru
    _
  // Predicated region
  $region10: #{tpu_custom_call.1} parent=0 // pred_check
    _
  $region11: #{tpu_custom_call.1} parent=0 // pred_check_branch
    %13 = sbr.rel (0) target = $region13
  $region12: #{tpu_custom_call.1} parent=0 // pred_region
    _
  $region13: #{tpu_custom_call.1} parent=0 // pred_fallthru
    _
  %v14 = vld [vmem:[%s1] sm:$0xff]
  %v15 = vld [vmem:[%s1 + $0x8] sm:$0xff]
  %v16 = vld [vmem:[%s1 + $0x10] sm:$0xff]
  %v17 = vld [vmem:[%s1 + $0x18] sm:$0xff]
  %v18 = vld [vmem:[%s0] sm:$0xff]
  %v19 = vld [vmem:[%s2] sm:$0xff]
  %v20 = vld [vmem:[%s2 + $0x8] sm:$0xff]
  %v21 = vld [vmem:[%s2 + $0x10] sm:$0xff]
  %v22 = vld [vmem:[%s2 + $0x18] sm:$0xff]
  %24 = vset.pattern.permute.xlu0 0
  %25 = vperm.xlu0 %24, %v19
  %v26 = vpop.permute.xlu0 %25
  %29 = vset.pattern.permute.xlu0 0
  %30 = vperm.xlu0 %29, %v20
  %v31 = vpop.permute.xlu0 %30
  %34 = vset.pattern.permute.xlu0 0
  %35 = vperm.xlu0 %34, %v21
  %v36 = vpop.permute.xlu0 %35
  %39 = vset.pattern.permute.xlu0 0
  %40 = vperm.xlu0 %39, %v22
  %v41 = vpop.permute.xlu0 %40
  %vm43 = vcmask 64512
  %v45 = vsel %vm43, %v14, 0
  %v48 = vsel %vm43, %v15, 0
  %v51 = vsel %vm43, %v16, 0
  %v54 = vsel %vm43, %v17, 0
  %56 = vmatprep.subr.mxu0 0.0
  %57 = vmatpush1.msra.mxu0 %v18
  %58 = vmatprep.subr.mxu0 0.0
  %59 = vmatpush1.msra.mxu0 0.0
  %60 = vmatprep.subr.mxu0 0.0
  %61 = vmatpush1.msra.mxu0 0.0
  %62 = vmatprep.subr.mxu0 0.0
  %63 = vmatpush1.msra.mxu0 0.0
  %64 = vmatprep.subr.mxu0 0.0
  %65 = vmatpush1.msra.mxu0 0.0
  %66 = vmatprep.subr.mxu0 0.0
  %67 = vmatpush1.msra.mxu0 0.0
  %68 = vmatprep.subr.mxu0 0.0
  %69 = vmatpush1.msra.mxu0 0.0
  %70 = vmatprep.subr.mxu0 0.0
  %71 = vmatpush1.msra.mxu0 0.0
  %72 = vmatprep.subr.mxu0 0.0
  %73 = vmatpush1.msra.mxu0 0.0
  %74 = vmatprep.subr.mxu0 0.0
  %75 = vmatpush1.msra.mxu0 0.0
  %76 = vmatprep.subr.mxu0 0.0
  %77 = vmatpush1.msra.mxu0 0.0
  %78 = vmatprep.subr.mxu0 0.0
  %79 = vmatpush1.msra.mxu0 0.0
  %80 = vmatprep.subr.mxu0 0.0
  %81 = vmatpush1.msra.mxu0 0.0
  %82 = vmatprep.subr.mxu0 0.0
  %83 = vmatpush1.msra.mxu0 0.0
  %84 = vmatprep.subr.mxu0 0.0
  %85 = vmatpush1.msra.mxu0 0.0
  %86 = vmatprep.subr.mxu0 0.0
  %87 = vmatpush1.msra.mxu0 0.0
  %88 = vmatprep.subr.mxu0 0.0
  %89 = vmatpush1.msra.mxu0 0.0
  %90 = vmatprep.subr.mxu0 0.0
  %91 = vmatpush1.msra.mxu0 0.0
  %92 = vmatprep.subr.mxu0 0.0
  %93 = vmatpush1.msra.mxu0 0.0
  %94 = vmatprep.subr.mxu0 0.0
  %95 = vmatpush1.msra.mxu0 0.0
  %96 = vmatprep.subr.mxu0 0.0
  %97 = vmatpush1.msra.mxu0 0.0
  %98 = vmatprep.subr.mxu0 0.0
  %99 = vmatpush1.msra.mxu0 0.0
  %100 = vmatprep.subr.mxu0 0.0
  %101 = vmatpush1.msra.mxu0 0.0
  %102 = vmatprep.subr.mxu0 0.0
  %103 = vmatpush1.msra.mxu0 0.0
  %104 = vmatprep.subr.mxu0 0.0
  %105 = vmatpush1.msra.mxu0 0.0
  %106 = vmatprep.subr.mxu0 0.0
  %107 = vmatpush1.msra.mxu0 0.0
  %108 = vmatprep.subr.mxu0 0.0
  %109 = vmatpush1.msra.mxu0 0.0
  %110 = vmatprep.subr.mxu0 0.0
  %111 = vmatpush1.msra.mxu0 0.0
  %112 = vmatprep.subr.mxu0 0.0
  %113 = vmatpush1.msra.mxu0 0.0
  %114 = vmatprep.subr.mxu0 0.0
  %115 = vmatpush1.msra.mxu0 0.0
  %116 = vmatprep.subr.mxu0 0.0
  %117 = vmatpush1.msra.mxu0 0.0
  %118 = vmatprep.subr.mxu0 0.0
  %119 = vmatpush1.msra.mxu0 0.0
  %120 = vmatprep.mubr.f32.mxu0 0.0
  %121 = vmatmul.mubr.f32.gmra.mrb[0].mxu0 %v45
  %v122 = vpop.f32.mrb[0].mxu0
  %v123 = vadd.f32 %v26, %v122
  %v124 = vpop.f32.mrb[0].mxu0
  %125 = vmatprep.mubr.f32.mxu0 0.0
  %126 = vmatmul.mubr.f32.gmra.mrb[0].mxu0 %v48
  %v127 = vpop.f32.mrb[0].mxu0
  %v128 = vadd.f32 %v31, %v127
  %v129 = vpop.f32.mrb[0].mxu0
  %130 = vmatprep.mubr.f32.mxu0 0.0
  %131 = vmatmul.mubr.f32.gmra.mrb[0].mxu0 %v51
  %v132 = vpop.f32.mrb[0].mxu0
  %v133 = vadd.f32 %v36, %v132
  %v134 = vpop.f32.mrb[0].mxu0
  %135 = vmatprep.mubr.f32.mxu0 0.0
  %136 = vmatmul.mubr.f32.gmra.mrb[0].mxu0 %v54
  %v137 = vpop.f32.mrb[0].mxu0
  %v138 = vadd.f32 %v41, %v137
  %v139 = vpop.f32.mrb[0].mxu0
  %140 = vdwg.mxu0
  %vm141 = vcmask 130048
  %142 = vst.msk [vmem:[%s3] sm:$0xff] %vm141, %v123
  %143 = vst.msk [vmem:[%s3 + $0x8] sm:$0xff] %vm141, %v128
  %144 = vst.msk [vmem:[%s3 + $0x10] sm:$0xff] %vm141, %v133
  %145 = vst.msk [vmem:[%s3 + $0x18] sm:$0xff] %vm141, %v138
  // Predicated region
  $region14: #{tpu_custom_call.1} parent=0 // pred_check
    _
  $region15: #{tpu_custom_call.1} parent=0 // pred_check_branch
    %147 = sbr.rel (0) target = $region17
  $region16: #{tpu_custom_call.1} parent=0 // pred_region
    _
  $region17: #{tpu_custom_call.1} parent=0 // pred_fallthru
    _
  // Predicated region
  $region18: #{tpu_custom_call.1} parent=0 // pred_check
    _
  $region19: #{tpu_custom_call.1} parent=0 // pred_check_branch
    %149 = sbr.rel (0) target = $region21
  $region20: #{tpu_custom_call.1} parent=0 // pred_region
    _
  $region21: #{tpu_custom_call.1} parent=0 // pred_fallthru
    _

</llo_original>
